<compile_context>
chip_gen: v6e
topology: v6e:2x2x1
jax: 0.10.0
libtpu: 0.0.40
codegen_flags: <defaults>
</compile_context>

<pallas_src>
import functools

import jax
import jax.numpy as jnp
from jax.experimental import pallas as pl
from jax.experimental.pallas import tpu as pltpu

_LANE = 128


def _round_up(x, m):
    return ((x + m - 1) // m) * m


def _mlp_kernel(n_hidden, out_size, compute_dtype, *refs):
    """Fused MLP forward on one (TILE_B, in_size) batch tile.

    refs layout:
      [x_ref,
       w0_ref, b0_ref, ..., w_{n_hidden-1}_ref, b_{n_hidden-1}_ref,   # hidden stack
       wo_ref, bo_ref,
       out_ref]
    Hidden layers: Linear -> ReLU (dropout = identity in eval). Output layer: affine only,
    computed 128-lane wide in vregs, only the first `out_size` columns stored.
    Weights may be bf16 (MXU operands); accumulation / bias / ReLU are f32.
    """
    x_ref = refs[0]
    out_ref = refs[-1]
    p = refs[1:-1]

    h = x_ref[...].astype(compute_dtype)          # (tile, in_size) — K=in_size matmul

    for li in range(n_hidden):
        w = p[2 * li][...]                        # (K, N_pad) compute_dtype
        b = p[2 * li + 1][...]                    # (1, N_pad) f32 broadcast
        acc = jnp.dot(h, w, preferred_element_type=jnp.float32) + b
        h = jnp.maximum(acc, 0.0).astype(compute_dtype)   # padded cols stay exactly 0

    wo = p[2 * n_hidden][...]
    bo = p[2 * n_hidden + 1][...]
    logits = jnp.dot(h, wo, preferred_element_type=jnp.float32) + bo   # (tile, 128) f32
    out_ref[...] = logits[:, :out_size].astype(out_ref.dtype)          # store only real cols


def simple_alpha_connect4_forward(x, params, *, flatten=True, tile_b=8192,
                                  compute_dtype=jnp.bfloat16):
    """Run the fused MLP kernel.

    x: (B, 6, 7) board (if flatten=True) or (B, in_size).  May be f32 or bf16; it is cast to
       `compute_dtype` inside the kernel (passing bf16 halves input HBM traffic).
    params: list of (W, b) with W shape (in_features, out_features), b shape (out_features,).
            The last pair is the output layer.
    Returns (policy, value) with shapes (B, out_size-1) and (B, 1), float32.
    """
    if flatten:
        x = x.reshape(x.shape[0], -1)              # plain-JAX glue: nn.Flatten() (free reshape)
    B, in_size = x.shape

    n_hidden = len(params) - 1                     # hidden stack size (incl. first layer)
    out_size = params[-1][0].shape[1]

    # ---- weights: pad only the OUTPUT (N) dims to 128 lanes; K of the first layer stays at
    #      the true in_size so it matches the unpadded x block. Padded entries are zero, so
    #      padded activation lanes stay 0 through ReLU and contribute nothing downstream. ----
    dims = [in_size] + [w.shape[1] for (w, _) in params]
    dims_p = [in_size] + [_round_up(d, _LANE) for d in dims[1:]]

    flat_args = []
    for li, (w, b) in enumerate(params):
        kp, np_ = dims_p[li], dims_p[li + 1]
        w_p = jnp.zeros((kp, np_), dtype=compute_dtype).at[: w.shape[0], : w.shape[1]].set(
            w.astype(compute_dtype))
        b_p = jnp.zeros((1, np_), dtype=jnp.float32).at[0, : b.shape[0]].set(
            b.astype(jnp.float32))
        flat_args.append(w_p)
        flat_args.append(b_p)

    # ---- batch tiling: no padded HBM copy of x; ragged last tile is masked by Pallas. ----
    align = {4: 8, 2: 16, 1: 32}.get(jnp.dtype(x.dtype).itemsize, 8)
    tile = _round_up(max(1, min(tile_b, B)), align)
    if B >= 2 * align:
        # Keep >=2 grid steps so the "parallel" batch axis can shard across v7x's 2 TensorCores.
        tile = min(tile, _round_up(-(-B // 2), align))
    num_steps = -(-B // tile)
    grid = (num_steps,)

    x_spec = pl.BlockSpec((tile, in_size), lambda b: (b, 0))       # last dim == full array dim
    out_spec = pl.BlockSpec((tile, out_size), lambda b: (b, 0))    # last dim == full array dim
    param_specs = [pl.BlockSpec(a.shape, lambda b: (0, 0))         # VMEM-resident across steps
                   for a in flat_args]

    # Advisory cost estimate so XLA schedules the surrounding reshape/slice ops sensibly.
    flops = 2 * B * sum(dims_p[i] * dims_p[i + 1] for i in range(len(dims_p) - 1))
    bytes_accessed = (x.size * x.dtype.itemsize
                      + sum(a.size * a.dtype.itemsize for a in flat_args)
                      + B * out_size * 4)

    kernel = functools.partial(_mlp_kernel, n_hidden, out_size, compute_dtype)

    logits = pl.pallas_call(
        kernel,
        out_shape=jax.ShapeDtypeStruct((B, out_size), jnp.float32),
        grid=grid,
        in_specs=[x_spec] + param_specs,
        out_specs=out_spec,
        compiler_params=pltpu.CompilerParams(
            dimension_semantics=("parallel",),
            vmem_limit_bytes=32 * 1024 * 1024),
        cost_estimate=pl.CostEstimate(flops=flops, transcendentals=0,
                                      bytes_accessed=bytes_accessed),
    )(x, *flat_args)

    policy = logits[:, :-1]
    value = logits[:, -1:]
    return policy, value


def init_params(key, in_size, units, out_size):
    """Deterministic init, mirroring the shapes of the torch module.

    Weights are stored as (in_features, out_features) == torch Linear weight transposed.
    """
    sizes = [in_size] + list(units) + [out_size]
    params = []
    for i in range(len(sizes) - 1):
        key, kw, kb = jax.random.split(key, 3)
        fan_in = sizes[i]
        bound = 1.0 / jnp.sqrt(fan_in)
        w = jax.random.uniform(kw, (sizes[i], sizes[i + 1]), jnp.float32, -bound, bound)
        b = jax.random.uniform(kb, (sizes[i + 1],), jnp.float32, -bound, bound)
        params.append((w, b))
    return params


def reference_forward(x, params, *, flatten=True):
    """Pure-JAX reference for correctness checking."""
    if flatten:
        x = x.reshape(x.shape[0], -1)
    h = x.astype(jnp.float32)
    for (w, b) in params[:-1]:
        h = jnp.maximum(h @ w + b, 0.0)
    wo, bo = params[-1]
    logits = h @ wo + bo
    return logits[:, :-1], logits[:, -1:]


if __name__ == "__main__":
    # Connect4: 6x7 board -> in_size=42 (flatten=True), 7 policy columns + 1 value -> out_size=8.
    in_size = 6 * 7
    units = [64, 64]
    out_size = 8

    params = init_params(jax.random.PRNGKey(0), in_size, units, out_size)

    # --- small batch, f32 compute path (tight tolerance, single grid step) ---
    B = 8
    key, kx = jax.random.split(jax.random.PRNGKey(0))
    x = jax.random.normal(kx, (B, 6, 7), jnp.float32)

    policy, value = simple_alpha_connect4_forward(x, params, flatten=True,
                                                  compute_dtype=jnp.float32)
    policy, value = jax.block_until_ready(policy), jax.block_until_ready(value)
    ref_policy, ref_value = reference_forward(x, params, flatten=True)
    assert policy.shape == (B, out_size - 1), policy.shape
    assert value.shape == (B, 1), value.shape
    assert jnp.allclose(policy, ref_policy, atol=1e-5, rtol=1e-5)
    assert jnp.allclose(value, ref_value, atol=1e-5, rtol=1e-5)

    # --- larger non-multiple batch, explicit small tile -> multi-step grid + ragged tail, f32 ---
    B2 = 200
    key, kx2 = jax.random.split(key)
    x2 = jax.random.normal(kx2, (B2, 6, 7), jnp.float32)
    policy2, value2 = simple_alpha_connect4_forward(x2, params, flatten=True, tile_b=64,
                                                    compute_dtype=jnp.float32)
    policy2, value2 = jax.block_until_ready(policy2), jax.block_until_ready(value2)
    ref_policy2, ref_value2 = reference_forward(x2, params, flatten=True)
    assert policy2.shape == (B2, out_size - 1) and value2.shape == (B2, 1)
    assert jnp.allclose(policy2, ref_policy2, atol=1e-5, rtol=1e-5)
    assert jnp.allclose(value2, ref_value2, atol=1e-5, rtol=1e-5)

    # --- default path: bf16 weights/activations (f32 accumulation), f32 input, loose tolerance ---
    policy3, value3 = simple_alpha_connect4_forward(x2, params, flatten=True)
    policy3, value3 = jax.block_until_ready(policy3), jax.block_until_ready(value3)
    assert jnp.allclose(policy3, ref_policy2, atol=5e-2, rtol=5e-2)
    assert jnp.allclose(value3, ref_value2, atol=5e-2, rtol=5e-2)

    # --- bf16 input stream (halved input DMA, 16-row alignment), loose tolerance ---
    x2_bf16 = x2.astype(jnp.bfloat16)
    policy4, value4 = simple_alpha_connect4_forward(x2_bf16, params, flatten=True)
    policy4, value4 = jax.block_until_ready(policy4), jax.block_until_ready(value4)
    ref_policy4, ref_value4 = reference_forward(x2_bf16.astype(jnp.float32), params, flatten=True)
    assert policy4.shape == (B2, out_size - 1) and value4.shape == (B2, 1)
    assert jnp.allclose(policy4, ref_policy4, atol=5e-2, rtol=5e-2)
    assert jnp.allclose(value4, ref_value4, atol=5e-2, rtol=5e-2)

    print("KERNEL_OK")
</pallas_src>

<mosaic_0001>
module attributes {stable_mosaic.version = 11 : i64} {
  func.func @_mlp_kernel(%arg0: i32, %arg1: memref<8x42xf32, #tpu.memory_space<vmem>>, %arg2: memref<42x128xf32, #tpu.memory_space<vmem>>, %arg3: memref<1x128xf32, #tpu.memory_space<vmem>>, %arg4: memref<128x128xf32, #tpu.memory_space<vmem>>, %arg5: memref<1x128xf32, #tpu.memory_space<vmem>>, %arg6: memref<128x128xf32, #tpu.memory_space<vmem>>, %arg7: memref<1x128xf32, #tpu.memory_space<vmem>>, %arg8: memref<8x8xf32, #tpu.memory_space<vmem>>) attributes {dimension_semantics = [#tpu.dimension_semantics<parallel>], iteration_bounds = array<i64: 1>, scalar_prefetch = 0 : i64, scratch_operands = 0 : i64, tpu.core_type = #tpu.core_type<tc>, window_params = [{transform_indices = @transform_0, window_bounds = array<i64: 8, 42>}, {pipeline_mode = #tpu.pipeline_mode<synchronous>, transform_indices = @transform_1, window_bounds = array<i64: 42, 128>}, {pipeline_mode = #tpu.pipeline_mode<synchronous>, transform_indices = @transform_2, window_bounds = array<i64: 1, 128>}, {pipeline_mode = #tpu.pipeline_mode<synchronous>, transform_indices = @transform_3, window_bounds = array<i64: 128, 128>}, {pipeline_mode = #tpu.pipeline_mode<synchronous>, transform_indices = @transform_4, window_bounds = array<i64: 1, 128>}, {pipeline_mode = #tpu.pipeline_mode<synchronous>, transform_indices = @transform_5, window_bounds = array<i64: 128, 128>}, {pipeline_mode = #tpu.pipeline_mode<synchronous>, transform_indices = @transform_6, window_bounds = array<i64: 1, 128>}, {transform_indices = @transform_7, window_bounds = array<i64: 8, 8>}]} {
    %c0 = arith.constant 0 : index
    %c0_0 = arith.constant 0 : index
    %0 = vector.load %arg1[%c0, %c0_0] : memref<8x42xf32, #tpu.memory_space<vmem>>, vector<8x42xf32>
    %c0_1 = arith.constant 0 : index
    %c0_2 = arith.constant 0 : index
    %1 = vector.load %arg2[%c0_1, %c0_2] : memref<42x128xf32, #tpu.memory_space<vmem>>, vector<42x128xf32>
    %c0_3 = arith.constant 0 : index
    %c0_4 = arith.constant 0 : index
    %2 = vector.load %arg3[%c0_3, %c0_4] : memref<1x128xf32, #tpu.memory_space<vmem>>, vector<1x128xf32>
    %cst = arith.constant dense<0.000000e+00> : vector<8x128xf32>
    %3 = tpu.matmul %0, %1, %cst {dimension_numbers = #tpu.dot_dimension_numbers<[1], [0], [0], [1], [0, 0, 1, 1], [], []>} : vector<8x42xf32>, vector<42x128xf32>, vector<8x128xf32> -> vector<8x128xf32>
    %4 = vector.broadcast %2 : vector<1x128xf32> to vector<8x128xf32>
    %5 = arith.addf %3, %4 : vector<8x128xf32>
    %cst_5 = arith.constant 0.000000e+00 : f32
    %6 = vector.broadcast %cst_5 : f32 to vector<8x128xf32>
    %7 = arith.maximumf %5, %6 : vector<8x128xf32>
    %c0_6 = arith.constant 0 : index
    %c0_7 = arith.constant 0 : index
    %8 = vector.load %arg4[%c0_6, %c0_7] : memref<128x128xf32, #tpu.memory_space<vmem>>, vector<128x128xf32>
    %c0_8 = arith.constant 0 : index
    %c0_9 = arith.constant 0 : index
    %9 = vector.load %arg5[%c0_8, %c0_9] : memref<1x128xf32, #tpu.memory_space<vmem>>, vector<1x128xf32>
    %cst_10 = arith.constant dense<0.000000e+00> : vector<8x128xf32>
    %10 = tpu.matmul %7, %8, %cst_10 {dimension_numbers = #tpu.dot_dimension_numbers<[1], [0], [0], [1], [0, 0, 1, 1], [], []>} : vector<8x128xf32>, vector<128x128xf32>, vector<8x128xf32> -> vector<8x128xf32>
    %11 = vector.broadcast %9 : vector<1x128xf32> to vector<8x128xf32>
    %12 = arith.addf %10, %11 : vector<8x128xf32>
    %cst_11 = arith.constant 0.000000e+00 : f32
    %13 = vector.broadcast %cst_11 : f32 to vector<8x128xf32>
    %14 = arith.maximumf %12, %13 : vector<8x128xf32>
    %c0_12 = arith.constant 0 : index
    %c0_13 = arith.constant 0 : index
    %15 = vector.load %arg6[%c0_12, %c0_13] : memref<128x128xf32, #tpu.memory_space<vmem>>, vector<128x128xf32>
    %c0_14 = arith.constant 0 : index
    %c0_15 = arith.constant 0 : index
    %16 = vector.load %arg7[%c0_14, %c0_15] : memref<1x128xf32, #tpu.memory_space<vmem>>, vector<1x128xf32>
    %cst_16 = arith.constant dense<0.000000e+00> : vector<8x128xf32>
    %17 = tpu.matmul %14, %15, %cst_16 {dimension_numbers = #tpu.dot_dimension_numbers<[1], [0], [0], [1], [0, 0, 1, 1], [], []>} : vector<8x128xf32>, vector<128x128xf32>, vector<8x128xf32> -> vector<8x128xf32>
    %18 = vector.broadcast %16 : vector<1x128xf32> to vector<8x128xf32>
    %19 = arith.addf %17, %18 : vector<8x128xf32>
    %20 = vector.extract_strided_slice %19 {offsets = [0, 0], sizes = [8, 8], strides = [1, 1]} : vector<8x128xf32> to vector<8x8xf32>
    %c0_17 = arith.constant 0 : index
    %c0_18 = arith.constant 0 : index
    %21 = vector.load %arg8[%c0_17, %c0_18] : memref<8x8xf32, #tpu.memory_space<vmem>>, vector<8x8xf32>
    tpu.vector_store %arg8[%c0_17, %c0_18], %20 {strides = array<i32>} : memref<8x8xf32, #tpu.memory_space<vmem>>, vector<8x8xf32>,
    return
  }
  func.func @transform_0(%arg0: i32) -> (i32, i32) {
    %c0_i32 = arith.constant 0 : i32
    %c0_i32_0 = arith.constant 0 : i32
    return %arg0, %c0_i32 : i32, i32
  }
  func.func @transform_1(%arg0: i32) -> (i32, i32) {
    %c0_i32 = arith.constant 0 : i32
    %c0_i32_0 = arith.constant 0 : i32
    %c0_i32_1 = arith.constant 0 : i32
    return %c0_i32, %c0_i32_0 : i32, i32
  }
  func.func @transform_2(%arg0: i32) -> (i32, i32) {
    %c0_i32 = arith.constant 0 : i32
    %c0_i32_0 = arith.constant 0 : i32
    %c0_i32_1 = arith.constant 0 : i32
    return %c0_i32, %c0_i32_0 : i32, i32
  }
  func.func @transform_3(%arg0: i32) -> (i32, i32) {
    %c0_i32 = arith.constant 0 : i32
    %c0_i32_0 = arith.constant 0 : i32
    %c0_i32_1 = arith.constant 0 : i32
    return %c0_i32, %c0_i32_0 : i32, i32
  }
  func.func @transform_4(%arg0: i32) -> (i32, i32) {
    %c0_i32 = arith.constant 0 : i32
    %c0_i32_0 = arith.constant 0 : i32
    %c0_i32_1 = arith.constant 0 : i32
    return %c0_i32, %c0_i32_0 : i32, i32
  }
  func.func @transform_5(%arg0: i32) -> (i32, i32) {
    %c0_i32 = arith.constant 0 : i32
    %c0_i32_0 = arith.constant 0 : i32
    %c0_i32_1 = arith.constant 0 : i32
    return %c0_i32, %c0_i32_0 : i32, i32
  }
  func.func @transform_6(%arg0: i32) -> (i32, i32) {
    %c0_i32 = arith.constant 0 : i32
    %c0_i32_0 = arith.constant 0 : i32
    %c0_i32_1 = arith.constant 0 : i32
    return %c0_i32, %c0_i32_0 : i32, i32
  }
  func.func @transform_7(%arg0: i32) -> (i32, i32) {
    %c0_i32 = arith.constant 0 : i32
    %c0_i32_0 = arith.constant 0 : i32
    return %arg0, %c0_i32 : i32, i32
  }
}

</mosaic_0001>

<llo_original>
// kernel: tpu_custom_call.1
$region0: #{tpu_custom_call.1}
  #allocation0 [shape = 'u32[]', space=smem, size = 0x4, offset = 0x4, fixed_abs, tag = 'smem constant byte address 0x4 - core index']
  #allocation1 [shape = 'u32[144,128]{1,0:T(1,128)}', space=vmem, size = 0x12000, scoped, tag = 'internal scratch']
  %s0 = inlined_call_operand.hbm [shape: f32[8,42], index: 0, kind: input, shape index: {}]
  %s1 = inlined_call_operand.hbm [shape: f32[42,128], index: 1, kind: input, shape index: {}]
  %s2 = inlined_call_operand.vmem [shape: f32[1,128], index: 2, kind: input, shape index: {}]
  %s3 = inlined_call_operand.hbm [shape: f32[128,128], index: 3, kind: input, shape index: {}]
  %s4 = inlined_call_operand.vmem [shape: f32[1,128], index: 4, kind: input, shape index: {}]
  %s5 = inlined_call_operand.hbm [shape: f32[128,128], index: 5, kind: input, shape index: {}]
  %s6 = inlined_call_operand.vmem [shape: f32[1,128], index: 6, kind: input, shape index: {}]
  %s7 = inlined_call_operand.hbm [shape: f32[8,8], index: 7, kind: output, shape index: {}]
  %s8 = sld [smem:[#allocation0]]
  $region54: #{tpu_custom_call.1} parent=0
    _
  %s10 = ssub.s32 1, %s8
  %s11 = scalar_select 0, %s10, %s8
  $region1: #{tpu_custom_call.1} parent=0
    #allocation2 [shape = 'u8[4096]{0}', space=vmem, size = 0x1000, scoped, tag = 'input window, operand 0, single buffered']
    #allocation3 [shape = 's32[1]{0}', space=sflag, size = 0x4, scoped, tag = 'scoped memory for tpu_custom_call.1']
    #allocation4 [shape = 's32[1]{0}', space=sflag, size = 0x4, scoped, tag = 'scoped memory for tpu_custom_call.1']
    #allocation5 [shape = 'u8[24576]{0}', space=vmem, size = 0x6000, scoped, tag = 'input window, operand 1, single buffered']
    #allocation6 [shape = 's32[1]{0}', space=sflag, size = 0x4, scoped, tag = 'scoped memory for tpu_custom_call.1']
    #allocation7 [shape = 'u8[65536]{0}', space=vmem, size = 0x10000, scoped, tag = 'input window, operand 3, single buffered']
    #allocation8 [shape = 'u8[65536]{0}', space=vmem, size = 0x10000, scoped, tag = 'input window, operand 5, single buffered']
    #allocation9 [shape = 's32[1]{0}', space=sflag, size = 0x4, scoped, tag = 'scoped memory for tpu_custom_call.1']
    #allocation10 [shape = 'u8[4096]{0}', space=vmem, size = 0x1000, scoped, tag = 'output window, operand 0, single buffered']
    %12 = vsyncpa [#allocation3], 0
    %13 = vsyncpa [#allocation6], 0
    %14 = vsyncpa [#allocation9], 0
    %15 = vsyncpa [#allocation4], 0
    // Predicated region
    $region2: #{tpu_custom_call.1} parent=1 // pred_check
      _
    $region3: #{tpu_custom_call.1} parent=1 // pred_check_branch
      %17 = sbr.rel (0) target = $region5
    $region4: #{tpu_custom_call.1} parent=1 // pred_region
      %s19 = ssub.s32 128, 128
      %20 = vsyncadd [#allocation3], %s19
      %s22 = sshll.u32 [#allocation2], 4
      %s23 = int_to_ptr.vmem [resolvable:$true] %s22
      %25 = dma.hbm_to_vmem [thread:$0]  %s0, 128, %s23, [#allocation3]
    $region5: #{tpu_custom_call.1} parent=1 // pred_fallthru
      _
    // Predicated region
    $region6: #{tpu_custom_call.1} parent=1 // pred_check
      _
    $region7: #{tpu_custom_call.1} parent=1 // pred_check_branch
      %27 = sbr.rel (0) target = $region9
    $region8: #{tpu_custom_call.1} parent=1 // pred_region
      %s29 = ssub.s32 768, 768
      %30 = vsyncadd [#allocation6], %s29
      %s31 = sshll.u32 [#allocation5], 4
      %s32 = int_to_ptr.vmem [resolvable:$true] %s31
      %37 = dma.hbm_to_vmem [thread:$0]  %s1, 768, %s32, [#allocation6], 128, 128, 8
    $region9: #{tpu_custom_call.1} parent=1 // pred_fallthru
      _
    // Predicated region
    $region10: #{tpu_custom_call.1} parent=1 // pred_check
      _
    $region11: #{tpu_custom_call.1} parent=1 // pred_check_branch
      %39 = sbr.rel (0) target = $region13
    $region12: #{tpu_custom_call.1} parent=1 // pred_region
      _
    $region13: #{tpu_custom_call.1} parent=1 // pred_fallthru
      _
    // Predicated region
    $region14: #{tpu_custom_call.1} parent=1 // pred_check
      _
    $region15: #{tpu_custom_call.1} parent=1 // pred_check_branch
      %41 = sbr.rel (0) target = $region17
    $region16: #{tpu_custom_call.1} parent=1 // pred_region
      %s43 = ssub.s32 2048, 2048
      %44 = vsyncadd [#allocation6], %s43
      %s45 = sshll.u32 [#allocation7], 4
      %s46 = int_to_ptr.vmem [resolvable:$true] %s45
      %51 = dma.hbm_to_vmem [thread:$0]  %s3, 2048, %s46, [#allocation6], 128, 128, 8
    $region17: #{tpu_custom_call.1} parent=1 // pred_fallthru
      _
    // Predicated region
    $region18: #{tpu_custom_call.1} parent=1 // pred_check
      _
    $region19: #{tpu_custom_call.1} parent=1 // pred_check_branch
      %53 = sbr.rel (0) target = $region21
    $region20: #{tpu_custom_call.1} parent=1 // pred_region
      _
    $region21: #{tpu_custom_call.1} parent=1 // pred_fallthru
      _
    // Predicated region
    $region22: #{tpu_custom_call.1} parent=1 // pred_check
      _
    $region23: #{tpu_custom_call.1} parent=1 // pred_check_branch
      %55 = sbr.rel (0) target = $region25
    $region24: #{tpu_custom_call.1} parent=1 // pred_region
      %s57 = ssub.s32 2048, 2048
      %58 = vsyncadd [#allocation9], %s57
      %s59 = sshll.u32 [#allocation8], 4
      %s60 = int_to_ptr.vmem [resolvable:$true] %s59
      %65 = dma.hbm_to_vmem [thread:$0]  %s5, 2048, %s60, [#allocation9], 128, 128, 8
    $region25: #{tpu_custom_call.1} parent=1 // pred_fallthru
      _
    // Predicated region
    $region26: #{tpu_custom_call.1} parent=1 // pred_check
      _
    $region27: #{tpu_custom_call.1} parent=1 // pred_check_branch
      %67 = sbr.rel (0) target = $region29
    $region28: #{tpu_custom_call.1} parent=1 // pred_region
      _
    $region29: #{tpu_custom_call.1} parent=1 // pred_fallthru
      _
    // Predicated region
    $region30: #{tpu_custom_call.1} parent=1 // pred_check
      _
    $region31: #{tpu_custom_call.1} parent=1 // pred_check_branch
      %69 = sbr.rel (0) target = $region33
    $region32: #{tpu_custom_call.1} parent=1 // pred_region
      %70 = dma.done [#allocation3], 128
    $region33: #{tpu_custom_call.1} parent=1 // pred_fallthru
      _
    // Predicated region
    $region34: #{tpu_custom_call.1} parent=1 // pred_check
      _
    $region35: #{tpu_custom_call.1} parent=1 // pred_check_branch
      %72 = sbr.rel (0) target = $region37
    $region36: #{tpu_custom_call.1} parent=1 // pred_region
      %73 = dma.done [#allocation6], 768
    $region37: #{tpu_custom_call.1} parent=1 // pred_fallthru
      _
    // Predicated region
    $region38: #{tpu_custom_call.1} parent=1 // pred_check
      _
    $region39: #{tpu_custom_call.1} parent=1 // pred_check_branch
      %75 = sbr.rel (0) target = $region41
    $region40: #{tpu_custom_call.1} parent=1 // pred_region
      %76 = dma.done [#allocation6], 2048
    $region41: #{tpu_custom_call.1} parent=1 // pred_fallthru
      _
    // Predicated region
    $region42: #{tpu_custom_call.1} parent=1 // pred_check
      _
    $region43: #{tpu_custom_call.1} parent=1 // pred_check_branch
      %78 = sbr.rel (0) target = $region45
    $region44: #{tpu_custom_call.1} parent=1 // pred_region
      %79 = dma.done [#allocation9], 2048
    $region45: #{tpu_custom_call.1} parent=1 // pred_fallthru
      _
    %v80 = vld [vmem:[#allocation2] sm:$0xff]
    %v81 = vld [vmem:[#allocation5] sm:$0xff]
    %v82 = vld [vmem:[#allocation5 + $0x8] sm:$0xff]
    %v83 = vld [vmem:[#allocation5 + $0x10] sm:$0xff]
    %v84 = vld [vmem:[#allocation5 + $0x18] sm:$0xff]
    %v85 = vld [vmem:[#allocation5 + $0x20] sm:$0xff]
    %v86 = vld [vmem:[#allocation5 + $0x28] sm:$0x3]
    %v87 = vld [vmem:[%s2] sm:$0x1]
    %v89 = vlaneseq
    %v90 = vshrl.u32 %v89, 7
    %v91 = vsub.s32 0, %v90
    %v92 = vrot.slane %v87, %v91
    %vm94 = vcmask 343040
    %v96 = vsel %vm94, %v80, 0
    %vm98 = vcmask 1041408
    %v100 = vsel %vm98, %v86, 0
    %102 = vmatprep.subr.mxu0 0.0
    %103 = vmatpush1.msra.mxu0 0.0
    %104 = vmatprep.subr.mxu0 0.0
    %105 = vmatpush1.msra.mxu0 0.0
    %106 = vmatprep.subr.mxu0 0.0
    %107 = vmatpush1.msra.mxu0 0.0
    %108 = vmatprep.subr.mxu0 0.0
    %109 = vmatpush1.msra.mxu0 0.0
    %110 = vmatprep.subr.mxu0 0.0
    %111 = vmatpush1.msra.mxu0 0.0
    %112 = vmatprep.subr.mxu0 0.0
    %113 = vmatpush1.msra.mxu0 0.0
    %114 = vmatprep.subr.mxu0 0.0
    %115 = vmatpush1.msra.mxu0 0.0
    %116 = vmatprep.subr.mxu0 0.0
    %117 = vmatpush1.msra.mxu0 0.0
    %118 = vmatprep.subr.mxu0 0.0
    %119 = vmatpush1.msra.mxu0 0.0
    %120 = vmatprep.subr.mxu0 0.0
    %121 = vmatpush1.msra.mxu0 0.0
    %122 = vmatprep.subr.mxu0 0.0
    %123 = vmatpush1.msra.mxu0 %v100
    %124 = vmatprep.subr.mxu0 0.0
    %125 = vmatpush1.msra.mxu0 %v85
    %126 = vmatprep.subr.mxu0 0.0
    %127 = vmatpush1.msra.mxu0 %v84
    %128 = vmatprep.subr.mxu0 0.0
    %129 = vmatpush1.msra.mxu0 %v83
    %130 = vmatprep.subr.mxu0 0.0
    %131 = vmatpush1.msra.mxu0 %v82
    %132 = vmatprep.subr.mxu0 0.0
    %133 = vmatpush1.msra.mxu0 %v81
    %134 = vmatprep.subr.mxu0 0.0
    %135 = vmatpush2.msra.mxu0 0.0
    %136 = vmatprep.subr.mxu0 0.0
    %137 = vmatpush2.msra.mxu0 0.0
    %138 = vmatprep.subr.mxu0 0.0
    %139 = vmatpush2.msra.mxu0 0.0
    %140 = vmatprep.subr.mxu0 0.0
    %141 = vmatpush2.msra.mxu0 0.0
    %142 = vmatprep.subr.mxu0 0.0
    %143 = vmatpush2.msra.mxu0 0.0
    %144 = vmatprep.subr.mxu0 0.0
    %145 = vmatpush2.msra.mxu0 0.0
    %146 = vmatprep.subr.mxu0 0.0
    %147 = vmatpush2.msra.mxu0 0.0
    %148 = vmatprep.subr.mxu0 0.0
    %149 = vmatpush2.msra.mxu0 0.0
    %150 = vmatprep.subr.mxu0 0.0
    %151 = vmatpush2.msra.mxu0 0.0
    %152 = vmatprep.subr.mxu0 0.0
    %153 = vmatpush2.msra.mxu0 0.0
    %154 = vmatprep.subr.mxu0 0.0
    %155 = vmatpush2.msra.mxu0 0.0
    %156 = vmatprep.subr.mxu0 0.0
    %157 = vmatpush2.msra.mxu0 0.0
    %158 = vmatprep.subr.mxu0 0.0
    %159 = vmatpush2.msra.mxu0 0.0
    %160 = vmatprep.subr.mxu0 0.0
    %161 = vmatpush2.msra.mxu0 0.0
    %162 = vmatprep.subr.mxu0 0.0
    %163 = vmatpush2.msra.mxu0 0.0
    %164 = vmatprep.subr.mxu0 0.0
    %165 = vmatpush2.msra.mxu0 0.0
    %166 = vmatprep.mubr.f32.mxu0 0.0
    %167 = vmatmul.mubr.f32.gmra.mxu0 %v96
    %v168 = vpop.f32.mrf.mxu0
    %v169 = vadd.f32 %v92, %v168
    %v170 = vpop.f32.mrf.mxu0
    %171 = vdwg.mxu0
    %v172 = vmax.f32 %v169, 0.0
    %v173 = vld [vmem:[#allocation7] sm:$0xff]
    %v174 = vld [vmem:[#allocation7 + $0x8] sm:$0xff]
    %v175 = vld [vmem:[#allocation7 + $0x10] sm:$0xff]
    %v176 = vld [vmem:[#allocation7 + $0x18] sm:$0xff]
    %v177 = vld [vmem:[#allocation7 + $0x20] sm:$0xff]
    %v178 = vld [vmem:[#allocation7 + $0x28] sm:$0xff]
    %v179 = vld [vmem:[#allocation7 + $0x30] sm:$0xff]
    %v180 = vld [vmem:[#allocation7 + $0x38] sm:$0xff]
    %v181 = vld [vmem:[#allocation7 + $0x40] sm:$0xff]
    %v182 = vld [vmem:[#allocation7 + $0x48] sm:$0xff]
    %v183 = vld [vmem:[#allocation7 + $0x50] sm:$0xff]
    %v184 = vld [vmem:[#allocation7 + $0x58] sm:$0xff]
    %v185 = vld [vmem:[#allocation7 + $0x60] sm:$0xff]
    %v186 = vld [vmem:[#allocation7 + $0x68] sm:$0xff]
    %v187 = vld [vmem:[#allocation7 + $0x70] sm:$0xff]
    %v188 = vld [vmem:[#allocation7 + $0x78] sm:$0xff]
    %v189 = vld [vmem:[%s4] sm:$0x1]
    %v191 = vlaneseq
    %v192 = vshrl.u32 %v191, 7
    %v193 = vsub.s32 0, %v192
    %v194 = vrot.slane %v189, %v193
    %196 = vmatprep.subr.mxu0 0.0
    %197 = vmatpush1.msra.mxu0 %v188
    %198 = vmatprep.subr.mxu0 0.0
    %199 = vmatpush1.msra.mxu0 %v187
    %200 = vmatprep.subr.mxu0 0.0
    %201 = vmatpush1.msra.mxu0 %v186
    %202 = vmatprep.subr.mxu0 0.0
    %203 = vmatpush1.msra.mxu0 %v185
    %204 = vmatprep.subr.mxu0 0.0
    %205 = vmatpush1.msra.mxu0 %v184
    %206 = vmatprep.subr.mxu0 0.0
    %207 = vmatpush1.msra.mxu0 %v183
    %208 = vmatprep.subr.mxu0 0.0
    %209 = vmatpush1.msra.mxu0 %v182
    %210 = vmatprep.subr.mxu0 0.0
    %211 = vmatpush1.msra.mxu0 %v181
    %212 = vmatprep.subr.mxu0 0.0
    %213 = vmatpush1.msra.mxu0 %v180
    %214 = vmatprep.subr.mxu0 0.0
    %215 = vmatpush1.msra.mxu0 %v179
    %216 = vmatprep.subr.mxu0 0.0
    %217 = vmatpush1.msra.mxu0 %v178
    %218 = vmatprep.subr.mxu0 0.0
    %219 = vmatpush1.msra.mxu0 %v177
    %220 = vmatprep.subr.mxu0 0.0
    %221 = vmatpush1.msra.mxu0 %v176
    %222 = vmatprep.subr.mxu0 0.0
    %223 = vmatpush1.msra.mxu0 %v175
    %224 = vmatprep.subr.mxu0 0.0
    %225 = vmatpush1.msra.mxu0 %v174
    %226 = vmatprep.subr.mxu0 0.0
    %227 = vmatpush1.msra.mxu0 %v173
    %228 = vmatprep.subr.mxu0 0.0
    %229 = vmatpush2.msra.mxu0 0.0
    %230 = vmatprep.subr.mxu0 0.0
    %231 = vmatpush2.msra.mxu0 0.0
    %232 = vmatprep.subr.mxu0 0.0
    %233 = vmatpush2.msra.mxu0 0.0
    %234 = vmatprep.subr.mxu0 0.0
    %235 = vmatpush2.msra.mxu0 0.0
    %236 = vmatprep.subr.mxu0 0.0
    %237 = vmatpush2.msra.mxu0 0.0
    %238 = vmatprep.subr.mxu0 0.0
    %239 = vmatpush2.msra.mxu0 0.0
    %240 = vmatprep.subr.mxu0 0.0
    %241 = vmatpush2.msra.mxu0 0.0
    %242 = vmatprep.subr.mxu0 0.0
    %243 = vmatpush2.msra.mxu0 0.0
    %244 = vmatprep.subr.mxu0 0.0
    %245 = vmatpush2.msra.mxu0 0.0
    %246 = vmatprep.subr.mxu0 0.0
    %247 = vmatpush2.msra.mxu0 0.0
    %248 = vmatprep.subr.mxu0 0.0
    %249 = vmatpush2.msra.mxu0 0.0
    %250 = vmatprep.subr.mxu0 0.0
    %251 = vmatpush2.msra.mxu0 0.0
    %252 = vmatprep.subr.mxu0 0.0
    %253 = vmatpush2.msra.mxu0 0.0
    %254 = vmatprep.subr.mxu0 0.0
    %255 = vmatpush2.msra.mxu0 0.0
    %256 = vmatprep.subr.mxu0 0.0
    %257 = vmatpush2.msra.mxu0 0.0
    %258 = vmatprep.subr.mxu0 0.0
    %259 = vmatpush2.msra.mxu0 0.0
    %260 = vmatprep.mubr.f32.mxu0 0.0
    %261 = vmatmul.mubr.f32.gmra.mxu0 %v172
    %v262 = vpop.f32.mrf.mxu0
    %v263 = vadd.f32 %v194, %v262
    %v264 = vpop.f32.mrf.mxu0
    %265 = vdwg.mxu0
    %v266 = vmax.f32 %v263, 0.0
    %v267 = vld [vmem:[#allocation8] sm:$0xff]
    %v268 = vld [vmem:[#allocation8 + $0x8] sm:$0xff]
    %v269 = vld [vmem:[#allocation8 + $0x10] sm:$0xff]
    %v270 = vld [vmem:[#allocation8 + $0x18] sm:$0xff]
    %v271 = vld [vmem:[#allocation8 + $0x20] sm:$0xff]
    %v272 = vld [vmem:[#allocation8 + $0x28] sm:$0xff]
    %v273 = vld [vmem:[#allocation8 + $0x30] sm:$0xff]
    %v274 = vld [vmem:[#allocation8 + $0x38] sm:$0xff]
    %v275 = vld [vmem:[#allocation8 + $0x40] sm:$0xff]
    %v276 = vld [vmem:[#allocation8 + $0x48] sm:$0xff]
    %v277 = vld [vmem:[#allocation8 + $0x50] sm:$0xff]
    %v278 = vld [vmem:[#allocation8 + $0x58] sm:$0xff]
    %v279 = vld [vmem:[#allocation8 + $0x60] sm:$0xff]
    %v280 = vld [vmem:[#allocation8 + $0x68] sm:$0xff]
    %v281 = vld [vmem:[#allocation8 + $0x70] sm:$0xff]
    %v282 = vld [vmem:[#allocation8 + $0x78] sm:$0xff]
    %v283 = vld [vmem:[%s6] sm:$0x1]
    %v285 = vlaneseq
    %v286 = vshrl.u32 %v285, 7
    %v287 = vsub.s32 0, %v286
    %v288 = vrot.slane %v283, %v287
    %290 = vmatprep.subr.mxu0 0.0
    %291 = vmatpush1.msra.mxu0 %v282
    %292 = vmatprep.subr.mxu0 0.0
    %293 = vmatpush1.msra.mxu0 %v281
    %294 = vmatprep.subr.mxu0 0.0
    %295 = vmatpush1.msra.mxu0 %v280
    %296 = vmatprep.subr.mxu0 0.0
    %297 = vmatpush1.msra.mxu0 %v279
    %298 = vmatprep.subr.mxu0 0.0
    %299 = vmatpush1.msra.mxu0 %v278
    %300 = vmatprep.subr.mxu0 0.0
    %301 = vmatpush1.msra.mxu0 %v277
    %302 = vmatprep.subr.mxu0 0.0
    %303 = vmatpush1.msra.mxu0 %v276
    %304 = vmatprep.subr.mxu0 0.0
    %305 = vmatpush1.msra.mxu0 %v275
    %306 = vmatprep.subr.mxu0 0.0
    %307 = vmatpush1.msra.mxu0 %v274
    %308 = vmatprep.subr.mxu0 0.0
    %309 = vmatpush1.msra.mxu0 %v273
    %310 = vmatprep.subr.mxu0 0.0
    %311 = vmatpush1.msra.mxu0 %v272
    %312 = vmatprep.subr.mxu0 0.0
    %313 = vmatpush1.msra.mxu0 %v271
    %314 = vmatprep.subr.mxu0 0.0
    %315 = vmatpush1.msra.mxu0 %v270
    %316 = vmatprep.subr.mxu0 0.0
    %317 = vmatpush1.msra.mxu0 %v269
    %318 = vmatprep.subr.mxu0 0.0
    %319 = vmatpush1.msra.mxu0 %v268
    %320 = vmatprep.subr.mxu0 0.0
    %321 = vmatpush1.msra.mxu0 %v267
    %322 = vmatprep.subr.mxu0 0.0
    %323 = vmatpush2.msra.mxu0 0.0
    %324 = vmatprep.subr.mxu0 0.0
    %325 = vmatpush2.msra.mxu0 0.0
    %326 = vmatprep.subr.mxu0 0.0
    %327 = vmatpush2.msra.mxu0 0.0
    %328 = vmatprep.subr.mxu0 0.0
    %329 = vmatpush2.msra.mxu0 0.0
    %330 = vmatprep.subr.mxu0 0.0
    %331 = vmatpush2.msra.mxu0 0.0
    %332 = vmatprep.subr.mxu0 0.0
    %333 = vmatpush2.msra.mxu0 0.0
    %334 = vmatprep.subr.mxu0 0.0
    %335 = vmatpush2.msra.mxu0 0.0
    %336 = vmatprep.subr.mxu0 0.0
    %337 = vmatpush2.msra.mxu0 0.0
    %338 = vmatprep.subr.mxu0 0.0
    %339 = vmatpush2.msra.mxu0 0.0
    %340 = vmatprep.subr.mxu0 0.0
    %341 = vmatpush2.msra.mxu0 0.0
    %342 = vmatprep.subr.mxu0 0.0
    %343 = vmatpush2.msra.mxu0 0.0
    %344 = vmatprep.subr.mxu0 0.0
    %345 = vmatpush2.msra.mxu0 0.0
    %346 = vmatprep.subr.mxu0 0.0
    %347 = vmatpush2.msra.mxu0 0.0
    %348 = vmatprep.subr.mxu0 0.0
    %349 = vmatpush2.msra.mxu0 0.0
    %350 = vmatprep.subr.mxu0 0.0
    %351 = vmatpush2.msra.mxu0 0.0
    %352 = vmatprep.subr.mxu0 0.0
    %353 = vmatpush2.msra.mxu0 0.0
    %354 = vmatprep.mubr.f32.mxu0 0.0
    %355 = vmatmul.mubr.f32.gmra.mxu0 %v266
    %v356 = vpop.f32.mrf.mxu0
    %v357 = vadd.f32 %v288, %v356
    %v358 = vpop.f32.mrf.mxu0
    %359 = vdwg.mxu0
    %vm360 = vcmask 64512
    %361 = vst.msk [vmem:[#allocation10] sm:$0xff] %vm360, %v357
    // Predicated region
    $region46: #{tpu_custom_call.1} parent=1 // pred_check
      _
    $region47: #{tpu_custom_call.1} parent=1 // pred_check_branch
      %363 = sbr.rel (0) target = $region49
    $region48: #{tpu_custom_call.1} parent=1 // pred_region
      %s365 = ssub.s32 128, 128
      %366 = vsyncadd [#allocation4], %s365
      %s368 = sshll.u32 [#allocation10], 4
      %s369 = int_to_ptr.vmem [resolvable:$true] %s368
      %371 = dma.vmem_to_hbm [thread:$0]  %s369, 128, %s7, [#allocation4]
    $region49: #{tpu_custom_call.1} parent=1 // pred_fallthru
      _
    // Predicated region
    $region50: #{tpu_custom_call.1} parent=1 // pred_check
      _
    $region51: #{tpu_custom_call.1} parent=1 // pred_check_branch
      %373 = sbr.rel (0) target = $region53
    $region52: #{tpu_custom_call.1} parent=1 // pred_region
      %374 = dma.done [#allocation4], 128
    $region53: #{tpu_custom_call.1} parent=1 // pred_fallthru
      _
    %375 = vsyncpa [#allocation3], 1
    %376 = vsyncpa [#allocation6], 1
    %377 = vsyncpa [#allocation9], 1
    %378 = vsyncpa [#allocation4], 1

</llo_original>
